<compile_context>
chip_gen: v6e
topology: v6e:2x2x1
jax: 0.10.0
libtpu: 0.0.40
codegen_flags: <defaults>
</compile_context>

<pallas_src>
import numpy as np
import jax
import jax.numpy as jnp
from jax.experimental import pallas as pl
from jax.experimental.pallas import tpu as pltpu

GRID_SIZE = 5
SPLINE_ORDER = 3
NUM_COEFF = GRID_SIZE + SPLINE_ORDER            # 8   basis functions per input feature
NUM_KNOTS = GRID_SIZE + 2 * SPLINE_ORDER + 1    # 12  knot positions per input feature
NSEG = NUM_KNOTS                                # 12  lane segments in the working array
GRID_RANGE = (-1.0, 1.0)
_H = (GRID_RANGE[1] - GRID_RANGE[0]) / GRID_SIZE
# Uniform knot positions (the module's default grid; identical for every feature).
# TODO(synk): after update_grid() the PyTorch module has a per-feature,
# non-uniform grid; that would require passing the grid in as a kernel input
# instead of baked constants.  Forward with the default init grid is exactly
# this uniform grid.
_KNOTS = [float(v) for v in
          (np.arange(-SPLINE_ORDER, GRID_SIZE + SPLINE_ORDER + 1, dtype=np.float64)
           * _H + GRID_RANGE[0])]


def _cdiv(a, b):
    return -(-a // b)


def _round_up(x, m):
    return (x + m - 1) // m * m


def _kan_layer(x, ws_ref, wb_ref, knot_lo):
    """One KANLinear layer on a (TB, IN) f32 activation tile -> (TB, OUT) f32.

    knot_lo: (1, NSEG*IN) f32 per-lane knot constant, knot_lo[:, c*IN + i] = knot[c].
    """
    tb, in_f = x.shape
    w = NSEG * in_f
    # Lane-dense working array: lane l = c*IN + i carries (feature i, coefficient c).
    x_rep = jnp.concatenate([x] * NSEG, axis=-1)                    # (TB, 12*IN)
    d = x_rep - knot_lo                                             # x - knot[c]
    # Degree-0 indicator bases: knot[c] <= x < knot[c] + h (uniform grid).
    b = jnp.logical_and(d >= 0.0, d < _H).astype(jnp.float32)
    # Cox-de-Boor recursion, dense over all coefficients at once.  On the
    # uniform grid the knot-difference denominators are k*h (scalar), so the
    # step is mul/sub/mul/mul/add on the wide array plus one lane rotation
    # (XLU) to fetch the bases[c+1] neighbour.  Garbage only ever lands in
    # segments >= NUM_COEFF, which are never read back.
    for k in range(1, SPLINE_ORDER + 1):
        inv_dk = 1.0 / (k * _H)
        ck = (k + 1.0) / k
        left = d * inv_dk                                           # (x - knot[c]) / (k h)
        if w % 128 == 0:
            nxt = pltpu.roll(b, shift=w - in_f, axis=1)             # segment c+1 -> c
        else:
            nxt = jnp.concatenate([b[:, in_f:], b[:, :in_f]], axis=-1)
        b = left * b + (ck - left) * nxt
    # Final degree-3 bases live in segments 0..7 -> already the MXU LHS layout.
    bases = b[:, :NUM_COEFF * in_f].astype(jnp.bfloat16)            # (TB, 8*IN)
    # SiLU base branch: exp + approx reciprocal both use the EUP slot.
    silu = x * pl.reciprocal(1.0 + jnp.exp(-x), approx=True)
    # Spline branch: bf16 MXU contraction with f32 accumulation.
    out = jnp.dot(bases, ws_ref[...], preferred_element_type=jnp.float32)
    # Base branch kept in f32 (small K) for accuracy across stacked layers.
    out = out + jnp.dot(silu, wb_ref[...], preferred_element_type=jnp.float32)
    return out


def _make_fused_kernel(num_layers, in_dims):
    def kernel(*refs):
        x_ref = refs[0]
        w_refs = refs[1:1 + 2 * num_layers]
        out_ref = refs[1 + 2 * num_layers]
        # Per-lane knot constants, hoisted out of the layer loop and shared
        # across layers with the same in_features.
        knots = {}
        for in_f in sorted(set(in_dims)):
            knots[in_f] = jnp.concatenate(
                [jnp.full((1, in_f), _KNOTS[c], jnp.float32) for c in range(NSEG)],
                axis=-1)                                            # (1, 12*IN)
        act = x_ref[...].astype(jnp.float32)
        for l in range(num_layers):
            act = _kan_layer(act, w_refs[2 * l], w_refs[2 * l + 1],
                             knots[in_dims[l]])
        out_ref[...] = act.astype(out_ref.dtype)
    return kernel


def kan_forward(x, weights, *, batch_block=128):
    """Fused KAN forward.

    weights: list of per-layer tuples
        (ws_packed bf16 (NUM_COEFF*IN, OUT)  -- coefficient-major spline weight,
         wb        f32  (IN, OUT)            -- base (SiLU) weight, transposed).
    """
    B, in0 = x.shape
    num_layers = len(weights)
    in_dims = [int(wb.shape[0]) for (_, wb) in weights]
    assert in_dims[0] == in0
    out_last = int(weights[-1][1].shape[1])

    # Pad the last layer's OUT to a multiple of 128 with zero columns so the
    # output writeback is lane-dense (unmasked vst); sliced off on return.
    out_pad = _round_up(out_last, 128)
    flat_w = []
    for l, (ws, wb) in enumerate(weights):
        if l == num_layers - 1 and out_pad != out_last:
            ws = jnp.pad(ws, ((0, 0), (0, out_pad - out_last)))
            wb = jnp.pad(wb, ((0, 0), (0, out_pad - out_last)))
        flat_w += [ws, wb]

    # Batch tiling: balance the tile to the batch (minimal zero-row padding)
    # and give v7x's two TensorCores at least 2 grid steps when B > 8.
    num_tiles = _cdiv(B, batch_block)
    if num_tiles < 2 and B > 8:
        num_tiles = 2
    tb = _round_up(_cdiv(B, num_tiles), 8)
    Bp = _round_up(B, tb)
    if Bp != B:
        x = jnp.pad(x, ((0, Bp - B), (0, 0)))

    # All weights stay VMEM-resident (double-buffered) across the batch grid.
    w_bytes = sum(int(np.prod(w.shape)) * w.dtype.itemsize for w in flat_w)
    assert w_bytes <= 12 * 1024 * 1024, "packed weights too large for the fused kernel"

    in_specs = [pl.BlockSpec((tb, in0), lambda b: (b, 0))]
    for w in flat_w:
        in_specs.append(pl.BlockSpec(tuple(w.shape), lambda b: (0, 0)))  # grid-invariant

    out = pl.pallas_call(
        _make_fused_kernel(num_layers, in_dims),
        out_shape=jax.ShapeDtypeStruct((Bp, out_pad), jnp.float32),
        grid=(Bp // tb,),
        in_specs=in_specs,
        out_specs=pl.BlockSpec((tb, out_pad), lambda b: (b, 0)),
        compiler_params=pltpu.CompilerParams(
            dimension_semantics=("parallel",),
            vmem_limit_bytes=32 * 1024 * 1024),
    )(x, *flat_w)
    return out[:B, :out_last]


def init_kan_params(key, layers_hidden):
    """Deterministic synthetic init (shapes match KANLinear.__init__).

    Returns (kernel weights [(ws_packed bf16, wb f32), ...], f32 originals for ref).

    # TODO(synk): PyTorch's reset_parameters seeds spline_weight via a
    # torch.linalg.lstsq fit (curve2coeff) of random noise; that is init-time
    # only and does not change forward semantics, so plain uniform random
    # weights of the same shapes are used instead.
    """
    weights, originals = [], []
    for in_f, out_f in zip(layers_hidden[:-1], layers_hidden[1:]):
        key, k1, k2, k3 = jax.random.split(key, 4)
        base_w = jax.random.uniform(k1, (out_f, in_f), jnp.float32, -1.0, 1.0) / jnp.sqrt(
            jnp.float32(in_f))
        spline_w = jax.random.uniform(k2, (out_f, in_f, NUM_COEFF), jnp.float32,
                                      -1.0, 1.0) * 0.1
        scaler = jax.random.uniform(k3, (out_f, in_f), jnp.float32, -1.0, 1.0) / jnp.sqrt(
            jnp.float32(in_f))
        ws_scaled = spline_w * scaler[..., None]                     # (OUT, IN, C)
        # Coefficient-major rows match the kernel's lane layout (lane = c*IN + i).
        ws_packed = jnp.transpose(ws_scaled, (2, 1, 0)).reshape(
            NUM_COEFF * in_f, out_f).astype(jnp.bfloat16)            # (C*IN, OUT)
        wb = base_w.T.astype(jnp.float32)                            # (IN, OUT)
        weights.append((ws_packed, wb))
        originals.append((base_w, ws_scaled))
    return weights, originals


# ---- pure-JAX f32 reference (mirrors the PyTorch forward) for validation ----
def _ref_forward(x, originals):
    grid = jnp.asarray(_KNOTS, jnp.float32)[None, None, :]           # (1, 1, NK)
    for base_w, ws_scaled in originals:
        silu = x * jax.nn.sigmoid(x)
        base = silu @ base_w.T
        xe = x[:, :, None]
        bases = ((xe >= grid[..., :-1]) & (xe < grid[..., 1:])).astype(x.dtype)
        for k in range(1, SPLINE_ORDER + 1):
            bases = ((xe - grid[..., :-(k + 1)])
                     / (grid[..., k:-1] - grid[..., :-(k + 1)]) * bases[..., :-1]
                     + (grid[..., k + 1:] - xe)
                     / (grid[..., k + 1:] - grid[..., 1:-k]) * bases[..., 1:])
        spl = jnp.einsum('bic,oic->bo', bases, ws_scaled)
        x = base + spl
    return x


if __name__ == "__main__":
    layers_hidden = [32, 64, 32]
    batch = 8

    key = jax.random.PRNGKey(0)
    key, kx = jax.random.split(key)
    x = jax.random.normal(kx, (batch, layers_hidden[0]), jnp.float32) * 0.5

    weights, originals = init_kan_params(key, layers_hidden)

    out = jax.block_until_ready(kan_forward(x, weights))
    ref = _ref_forward(x, originals)
    assert out.shape == (batch, layers_hidden[-1])
    err = float(jnp.max(jnp.abs(out - ref)))
    assert jnp.allclose(out, ref, atol=3e-2, rtol=3e-2), f"max abs err {err}"

    # Multi-tile grid + row-padding path, plus knot-boundary / out-of-range
    # inputs (x == grid edges, |x| beyond the grid range).
    key, kx2 = jax.random.split(key)
    x2 = jax.random.normal(kx2, (300, layers_hidden[0]), jnp.float32) * 0.5
    x2 = x2.at[0, 0].set(GRID_RANGE[1]).at[0, 1].set(GRID_RANGE[0]).at[0, 2].set(2.5)
    out2 = jax.block_until_ready(kan_forward(x2, weights))
    ref2 = _ref_forward(x2, originals)
    assert out2.shape == (300, layers_hidden[-1])
    err2 = float(jnp.max(jnp.abs(out2 - ref2)))
    assert jnp.allclose(out2, ref2, atol=3e-2, rtol=3e-2), f"max abs err {err2}"

    print("KERNEL_OK")
</pallas_src>

<mosaic_0001>
module attributes {stable_mosaic.version = 11 : i64} {
  func.func @kernel(%arg0: i32, %arg1: memref<8x32xf32, #tpu.memory_space<vmem>>, %arg2: memref<256x64xbf16, #tpu.memory_space<vmem>>, %arg3: memref<32x64xf32, #tpu.memory_space<vmem>>, %arg4: memref<512x128xbf16, #tpu.memory_space<vmem>>, %arg5: memref<64x128xf32, #tpu.memory_space<vmem>>, %arg6: memref<8x128xf32, #tpu.memory_space<vmem>>) attributes {dimension_semantics = [#tpu.dimension_semantics<parallel>], iteration_bounds = array<i64: 1>, scalar_prefetch = 0 : i64, scratch_operands = 0 : i64, tpu.core_type = #tpu.core_type<tc>, window_params = [{transform_indices = @transform_0, window_bounds = array<i64: 8, 32>}, {pipeline_mode = #tpu.pipeline_mode<synchronous>, transform_indices = @transform_1, window_bounds = array<i64: 256, 64>}, {pipeline_mode = #tpu.pipeline_mode<synchronous>, transform_indices = @transform_2, window_bounds = array<i64: 32, 64>}, {pipeline_mode = #tpu.pipeline_mode<synchronous>, transform_indices = @transform_3, window_bounds = array<i64: 512, 128>}, {pipeline_mode = #tpu.pipeline_mode<synchronous>, transform_indices = @transform_4, window_bounds = array<i64: 64, 128>}, {transform_indices = @transform_5, window_bounds = array<i64: 8, 128>}]} {
    %cst = arith.constant -2.200000e+00 : f32
    %0 = vector.broadcast %cst : f32 to vector<1x32xf32>
    %cst_0 = arith.constant -1.800000e+00 : f32
    %1 = vector.broadcast %cst_0 : f32 to vector<1x32xf32>
    %cst_1 = arith.constant -1.400000e+00 : f32
    %2 = vector.broadcast %cst_1 : f32 to vector<1x32xf32>
    %cst_2 = arith.constant -1.000000e+00 : f32
    %3 = vector.broadcast %cst_2 : f32 to vector<1x32xf32>
    %cst_3 = arith.constant -6.000000e-01 : f32
    %4 = vector.broadcast %cst_3 : f32 to vector<1x32xf32>
    %cst_4 = arith.constant -2.000000e-01 : f32
    %5 = vector.broadcast %cst_4 : f32 to vector<1x32xf32>
    %cst_5 = arith.constant 2.000000e-01 : f32
    %6 = vector.broadcast %cst_5 : f32 to vector<1x32xf32>
    %cst_6 = arith.constant 6.000000e-01 : f32
    %7 = vector.broadcast %cst_6 : f32 to vector<1x32xf32>
    %cst_7 = arith.constant 1.000000e+00 : f32
    %8 = vector.broadcast %cst_7 : f32 to vector<1x32xf32>
    %cst_8 = arith.constant 1.400000e+00 : f32
    %9 = vector.broadcast %cst_8 : f32 to vector<1x32xf32>
    %cst_9 = arith.constant 1.800000e+00 : f32
    %10 = vector.broadcast %cst_9 : f32 to vector<1x32xf32>
    %cst_10 = arith.constant 2.200000e+00 : f32
    %11 = vector.broadcast %cst_10 : f32 to vector<1x32xf32>
    %12 = tpu.concatenate %0, %1, %2, %3, %4, %5, %6, %7, %8, %9, %10, %11 in 1 : vector<1x32xf32>, vector<1x32xf32>, vector<1x32xf32>, vector<1x32xf32>, vector<1x32xf32>, vector<1x32xf32>, vector<1x32xf32>, vector<1x32xf32>, vector<1x32xf32>, vector<1x32xf32>, vector<1x32xf32>, vector<1x32xf32> -> vector<1x384xf32>
    %cst_11 = arith.constant -2.200000e+00 : f32
    %13 = vector.broadcast %cst_11 : f32 to vector<1x64xf32>
    %cst_12 = arith.constant -1.800000e+00 : f32
    %14 = vector.broadcast %cst_12 : f32 to vector<1x64xf32>
    %cst_13 = arith.constant -1.400000e+00 : f32
    %15 = vector.broadcast %cst_13 : f32 to vector<1x64xf32>
    %cst_14 = arith.constant -1.000000e+00 : f32
    %16 = vector.broadcast %cst_14 : f32 to vector<1x64xf32>
    %cst_15 = arith.constant -6.000000e-01 : f32
    %17 = vector.broadcast %cst_15 : f32 to vector<1x64xf32>
    %cst_16 = arith.constant -2.000000e-01 : f32
    %18 = vector.broadcast %cst_16 : f32 to vector<1x64xf32>
    %cst_17 = arith.constant 2.000000e-01 : f32
    %19 = vector.broadcast %cst_17 : f32 to vector<1x64xf32>
    %cst_18 = arith.constant 6.000000e-01 : f32
    %20 = vector.broadcast %cst_18 : f32 to vector<1x64xf32>
    %cst_19 = arith.constant 1.000000e+00 : f32
    %21 = vector.broadcast %cst_19 : f32 to vector<1x64xf32>
    %cst_20 = arith.constant 1.400000e+00 : f32
    %22 = vector.broadcast %cst_20 : f32 to vector<1x64xf32>
    %cst_21 = arith.constant 1.800000e+00 : f32
    %23 = vector.broadcast %cst_21 : f32 to vector<1x64xf32>
    %cst_22 = arith.constant 2.200000e+00 : f32
    %24 = vector.broadcast %cst_22 : f32 to vector<1x64xf32>
    %25 = tpu.concatenate %13, %14, %15, %16, %17, %18, %19, %20, %21, %22, %23, %24 in 1 : vector<1x64xf32>, vector<1x64xf32>, vector<1x64xf32>, vector<1x64xf32>, vector<1x64xf32>, vector<1x64xf32>, vector<1x64xf32>, vector<1x64xf32>, vector<1x64xf32>, vector<1x64xf32>, vector<1x64xf32>, vector<1x64xf32> -> vector<1x768xf32>
    %c0 = arith.constant 0 : index
    %c0_23 = arith.constant 0 : index
    %26 = vector.load %arg1[%c0, %c0_23] : memref<8x32xf32, #tpu.memory_space<vmem>>, vector<8x32xf32>
    %27 = tpu.concatenate %26, %26, %26, %26, %26, %26, %26, %26, %26, %26, %26, %26 in 1 : vector<8x32xf32>, vector<8x32xf32>, vector<8x32xf32>, vector<8x32xf32>, vector<8x32xf32>, vector<8x32xf32>, vector<8x32xf32>, vector<8x32xf32>, vector<8x32xf32>, vector<8x32xf32>, vector<8x32xf32>, vector<8x32xf32> -> vector<8x384xf32>
    %28 = vector.broadcast %12 : vector<1x384xf32> to vector<8x384xf32>
    %29 = arith.subf %27, %28 : vector<8x384xf32>
    %cst_24 = arith.constant 0.000000e+00 : f32
    %30 = vector.broadcast %cst_24 : f32 to vector<8x384xf32>
    %31 = arith.cmpf oge, %29, %30 : vector<8x384xf32>
    %cst_25 = arith.constant 4.000000e-01 : f32
    %32 = vector.broadcast %cst_25 : f32 to vector<8x384xf32>
    %33 = arith.cmpf olt, %29, %32 : vector<8x384xf32>
    %34 = arith.andi %31, %33 : vector<8x384xi1>
    %35 = arith.extui %34 : vector<8x384xi1> to vector<8x384xi32>
    %36 = arith.sitofp %35 : vector<8x384xi32> to vector<8x384xf32>
    %cst_26 = arith.constant 2.500000e+00 : f32
    %37 = vector.broadcast %cst_26 : f32 to vector<8x384xf32>
    %38 = arith.mulf %29, %37 : vector<8x384xf32>
    %c352_i32 = arith.constant 352 : i32
    %39 = tpu.dynamic_rotate %36 by %c352_i32 dim 1 : vector<8x384xf32>, i32 -> vector<8x384xf32>
    %40 = arith.mulf %38, %36 : vector<8x384xf32>
    %cst_27 = arith.constant 2.000000e+00 : f32
    %41 = vector.broadcast %cst_27 : f32 to vector<8x384xf32>
    %42 = arith.subf %41, %38 : vector<8x384xf32>
    %43 = arith.mulf %42, %39 : vector<8x384xf32>
    %44 = arith.addf %40, %43 : vector<8x384xf32>
    %cst_28 = arith.constant 1.250000e+00 : f32
    %45 = vector.broadcast %cst_28 : f32 to vector<8x384xf32>
    %46 = arith.mulf %29, %45 : vector<8x384xf32>
    %c352_i32_29 = arith.constant 352 : i32
    %47 = tpu.dynamic_rotate %44 by %c352_i32_29 dim 1 : vector<8x384xf32>, i32 -> vector<8x384xf32>
    %48 = arith.mulf %46, %44 : vector<8x384xf32>
    %cst_30 = arith.constant 1.500000e+00 : f32
    %49 = vector.broadcast %cst_30 : f32 to vector<8x384xf32>
    %50 = arith.subf %49, %46 : vector<8x384xf32>
    %51 = arith.mulf %50, %47 : vector<8x384xf32>
    %52 = arith.addf %48, %51 : vector<8x384xf32>
    %cst_31 = arith.constant 0.833333313 : f32
    %53 = vector.broadcast %cst_31 : f32 to vector<8x384xf32>
    %54 = arith.mulf %29, %53 : vector<8x384xf32>
    %c352_i32_32 = arith.constant 352 : i32
    %55 = tpu.dynamic_rotate %52 by %c352_i32_32 dim 1 : vector<8x384xf32>, i32 -> vector<8x384xf32>
    %56 = arith.mulf %54, %52 : vector<8x384xf32>
    %cst_33 = arith.constant 1.33333337 : f32
    %57 = vector.broadcast %cst_33 : f32 to vector<8x384xf32>
    %58 = arith.subf %57, %54 : vector<8x384xf32>
    %59 = arith.mulf %58, %55 : vector<8x384xf32>
    %60 = arith.addf %56, %59 : vector<8x384xf32>
    %61 = vector.extract_strided_slice %60 {offsets = [0, 0], sizes = [8, 256], strides = [1, 1]} : vector<8x384xf32> to vector<8x256xf32>
    %62 = arith.truncf %61 : vector<8x256xf32> to vector<8x256xbf16>
    %cst_34 = arith.constant 0.000000e+00 : f32
    %63 = vector.broadcast %cst_34 : f32 to vector<8x32xf32>
    %64 = arith.subf %63, %26 : vector<8x32xf32>
    %65 = math.exp %64 : vector<8x32xf32>
    %cst_35 = arith.constant 1.000000e+00 : f32
    %66 = vector.broadcast %cst_35 : f32 to vector<8x32xf32>
    %67 = arith.addf %66, %65 : vector<8x32xf32>
    %68 = tpu.reciprocal %67 {approx = true} : vector<8x32xf32> -> vector<8x32xf32>
    %69 = arith.mulf %26, %68 : vector<8x32xf32>
    %c0_36 = arith.constant 0 : index
    %c0_37 = arith.constant 0 : index
    %70 = vector.load %arg2[%c0_36, %c0_37] : memref<256x64xbf16, #tpu.memory_space<vmem>>, vector<256x64xbf16>
    %cst_38 = arith.constant dense<0.000000e+00> : vector<8x64xf32>
    %71 = tpu.matmul %62, %70, %cst_38 {dimension_numbers = #tpu.dot_dimension_numbers<[1], [0], [0], [1], [0, 0, 1, 1], [], []>} : vector<8x256xbf16>, vector<256x64xbf16>, vector<8x64xf32> -> vector<8x64xf32>
    %c0_39 = arith.constant 0 : index
    %c0_40 = arith.constant 0 : index
    %72 = vector.load %arg3[%c0_39, %c0_40] : memref<32x64xf32, #tpu.memory_space<vmem>>, vector<32x64xf32>
    %cst_41 = arith.constant dense<0.000000e+00> : vector<8x64xf32>
    %73 = tpu.matmul %69, %72, %cst_41 {dimension_numbers = #tpu.dot_dimension_numbers<[1], [0], [0], [1], [0, 0, 1, 1], [], []>} : vector<8x32xf32>, vector<32x64xf32>, vector<8x64xf32> -> vector<8x64xf32>
    %74 = arith.addf %71, %73 : vector<8x64xf32>
    %75 = tpu.concatenate %74, %74, %74, %74, %74, %74, %74, %74, %74, %74, %74, %74 in 1 : vector<8x64xf32>, vector<8x64xf32>, vector<8x64xf32>, vector<8x64xf32>, vector<8x64xf32>, vector<8x64xf32>, vector<8x64xf32>, vector<8x64xf32>, vector<8x64xf32>, vector<8x64xf32>, vector<8x64xf32>, vector<8x64xf32> -> vector<8x768xf32>
    %76 = vector.broadcast %25 : vector<1x768xf32> to vector<8x768xf32>
    %77 = arith.subf %75, %76 : vector<8x768xf32>
    %cst_42 = arith.constant 0.000000e+00 : f32
    %78 = vector.broadcast %cst_42 : f32 to vector<8x768xf32>
    %79 = arith.cmpf oge, %77, %78 : vector<8x768xf32>
    %cst_43 = arith.constant 4.000000e-01 : f32
    %80 = vector.broadcast %cst_43 : f32 to vector<8x768xf32>
    %81 = arith.cmpf olt, %77, %80 : vector<8x768xf32>
    %82 = arith.andi %79, %81 : vector<8x768xi1>
    %83 = arith.extui %82 : vector<8x768xi1> to vector<8x768xi32>
    %84 = arith.sitofp %83 : vector<8x768xi32> to vector<8x768xf32>
    %cst_44 = arith.constant 2.500000e+00 : f32
    %85 = vector.broadcast %cst_44 : f32 to vector<8x768xf32>
    %86 = arith.mulf %77, %85 : vector<8x768xf32>
    %c704_i32 = arith.constant 704 : i32
    %87 = tpu.dynamic_rotate %84 by %c704_i32 dim 1 : vector<8x768xf32>, i32 -> vector<8x768xf32>
    %88 = arith.mulf %86, %84 : vector<8x768xf32>
    %cst_45 = arith.constant 2.000000e+00 : f32
    %89 = vector.broadcast %cst_45 : f32 to vector<8x768xf32>
    %90 = arith.subf %89, %86 : vector<8x768xf32>
    %91 = arith.mulf %90, %87 : vector<8x768xf32>
    %92 = arith.addf %88, %91 : vector<8x768xf32>
    %cst_46 = arith.constant 1.250000e+00 : f32
    %93 = vector.broadcast %cst_46 : f32 to vector<8x768xf32>
    %94 = arith.mulf %77, %93 : vector<8x768xf32>
    %c704_i32_47 = arith.constant 704 : i32
    %95 = tpu.dynamic_rotate %92 by %c704_i32_47 dim 1 : vector<8x768xf32>, i32 -> vector<8x768xf32>
    %96 = arith.mulf %94, %92 : vector<8x768xf32>
    %cst_48 = arith.constant 1.500000e+00 : f32
    %97 = vector.broadcast %cst_48 : f32 to vector<8x768xf32>
    %98 = arith.subf %97, %94 : vector<8x768xf32>
    %99 = arith.mulf %98, %95 : vector<8x768xf32>
    %100 = arith.addf %96, %99 : vector<8x768xf32>
    %cst_49 = arith.constant 0.833333313 : f32
    %101 = vector.broadcast %cst_49 : f32 to vector<8x768xf32>
    %102 = arith.mulf %77, %101 : vector<8x768xf32>
    %c704_i32_50 = arith.constant 704 : i32
    %103 = tpu.dynamic_rotate %100 by %c704_i32_50 dim 1 : vector<8x768xf32>, i32 -> vector<8x768xf32>
    %104 = arith.mulf %102, %100 : vector<8x768xf32>
    %cst_51 = arith.constant 1.33333337 : f32
    %105 = vector.broadcast %cst_51 : f32 to vector<8x768xf32>
    %106 = arith.subf %105, %102 : vector<8x768xf32>
    %107 = arith.mulf %106, %103 : vector<8x768xf32>
    %108 = arith.addf %104, %107 : vector<8x768xf32>
    %109 = vector.extract_strided_slice %108 {offsets = [0, 0], sizes = [8, 512], strides = [1, 1]} : vector<8x768xf32> to vector<8x512xf32>
    %110 = arith.truncf %109 : vector<8x512xf32> to vector<8x512xbf16>
    %cst_52 = arith.constant 0.000000e+00 : f32
    %111 = vector.broadcast %cst_52 : f32 to vector<8x64xf32>
    %112 = arith.subf %111, %74 : vector<8x64xf32>
    %113 = math.exp %112 : vector<8x64xf32>
    %cst_53 = arith.constant 1.000000e+00 : f32
    %114 = vector.broadcast %cst_53 : f32 to vector<8x64xf32>
    %115 = arith.addf %114, %113 : vector<8x64xf32>
    %116 = tpu.reciprocal %115 {approx = true} : vector<8x64xf32> -> vector<8x64xf32>
    %117 = arith.mulf %74, %116 : vector<8x64xf32>
    %c0_54 = arith.constant 0 : index
    %c0_55 = arith.constant 0 : index
    %118 = vector.load %arg4[%c0_54, %c0_55] : memref<512x128xbf16, #tpu.memory_space<vmem>>, vector<512x128xbf16>
    %cst_56 = arith.constant dense<0.000000e+00> : vector<8x128xf32>
    %119 = tpu.matmul %110, %118, %cst_56 {dimension_numbers = #tpu.dot_dimension_numbers<[1], [0], [0], [1], [0, 0, 1, 1], [], []>} : vector<8x512xbf16>, vector<512x128xbf16>, vector<8x128xf32> -> vector<8x128xf32>
    %c0_57 = arith.constant 0 : index
    %c0_58 = arith.constant 0 : index
    %120 = vector.load %arg5[%c0_57, %c0_58] : memref<64x128xf32, #tpu.memory_space<vmem>>, vector<64x128xf32>
    %cst_59 = arith.constant dense<0.000000e+00> : vector<8x128xf32>
    %121 = tpu.matmul %117, %120, %cst_59 {dimension_numbers = #tpu.dot_dimension_numbers<[1], [0], [0], [1], [0, 0, 1, 1], [], []>} : vector<8x64xf32>, vector<64x128xf32>, vector<8x128xf32> -> vector<8x128xf32>
    %122 = arith.addf %119, %121 : vector<8x128xf32>
    %c0_60 = arith.constant 0 : index
    %c0_61 = arith.constant 0 : index
    %123 = vector.load %arg6[%c0_60, %c0_61] : memref<8x128xf32, #tpu.memory_space<vmem>>, vector<8x128xf32>
    tpu.vector_store %arg6[%c0_60, %c0_61], %122 {strides = array<i32>} : memref<8x128xf32, #tpu.memory_space<vmem>>, vector<8x128xf32>,
    return
  }
  func.func @transform_0(%arg0: i32) -> (i32, i32) {
    %c0_i32 = arith.constant 0 : i32
    %c0_i32_0 = arith.constant 0 : i32
    return %arg0, %c0_i32 : i32, i32
  }
  func.func @transform_1(%arg0: i32) -> (i32, i32) {
    %c0_i32 = arith.constant 0 : i32
    %c0_i32_0 = arith.constant 0 : i32
    %c0_i32_1 = arith.constant 0 : i32
    return %c0_i32, %c0_i32_0 : i32, i32
  }
  func.func @transform_2(%arg0: i32) -> (i32, i32) {
    %c0_i32 = arith.constant 0 : i32
    %c0_i32_0 = arith.constant 0 : i32
    %c0_i32_1 = arith.constant 0 : i32
    return %c0_i32, %c0_i32_0 : i32, i32
  }
  func.func @transform_3(%arg0: i32) -> (i32, i32) {
    %c0_i32 = arith.constant 0 : i32
    %c0_i32_0 = arith.constant 0 : i32
    %c0_i32_1 = arith.constant 0 : i32
    return %c0_i32, %c0_i32_0 : i32, i32
  }
  func.func @transform_4(%arg0: i32) -> (i32, i32) {
    %c0_i32 = arith.constant 0 : i32
    %c0_i32_0 = arith.constant 0 : i32
    %c0_i32_1 = arith.constant 0 : i32
    return %c0_i32, %c0_i32_0 : i32, i32
  }
  func.func @transform_5(%arg0: i32) -> (i32, i32) {
    %c0_i32 = arith.constant 0 : i32
    %c0_i32_0 = arith.constant 0 : i32
    return %arg0, %c0_i32 : i32, i32
  }
}

</mosaic_0001>

<llo_original>
// kernel: tpu_custom_call.1
$region0: #{tpu_custom_call.1}
  #allocation0 [shape = 'u32[]', space=smem, size = 0x4, offset = 0x4, fixed_abs, tag = 'smem constant byte address 0x4 - core index']
  #allocation1 [shape = 'u32[144,128]{1,0:T(1,128)}', space=vmem, size = 0x12000, scoped, tag = 'internal scratch']
  %s0 = inlined_call_operand.vmem [shape: f32[8,32], index: 0, kind: input, shape index: {}]
  %s1 = inlined_call_operand.vmem [shape: bf16[256,64], index: 1, kind: input, shape index: {}]
  %s2 = inlined_call_operand.vmem [shape: f32[32,64], index: 2, kind: input, shape index: {}]
  %s3 = inlined_call_operand.hbm [shape: bf16[512,128], index: 3, kind: input, shape index: {}]
  %s4 = inlined_call_operand.vmem [shape: f32[64,128], index: 4, kind: input, shape index: {}]
  %s5 = inlined_call_operand.hbm [shape: f32[8,128], index: 5, kind: output, shape index: {}]
  %s6 = sld [smem:[#allocation0]]
  $region34: #{tpu_custom_call.1} parent=0
    _
  %s8 = ssub.s32 1, %s6
  %s9 = scalar_select 0, %s8, %s6
  $region1: #{tpu_custom_call.1} parent=0
    #allocation2 [shape = 'u8[131072]{0}', space=vmem, size = 0x20000, scoped, tag = 'input window, operand 3, single buffered']
    #allocation3 [shape = 's32[1]{0}', space=sflag, size = 0x4, scoped, tag = 'scoped memory for tpu_custom_call.1']
    #allocation4 [shape = 's32[1]{0}', space=sflag, size = 0x4, scoped, tag = 'scoped memory for tpu_custom_call.1']
    #allocation5 [shape = 'u8[4096]{0}', space=vmem, size = 0x1000, scoped, tag = 'output window, operand 0, single buffered']
    %10 = vsyncpa [#allocation3], 0
    %11 = vsyncpa [#allocation4], 0
    // Predicated region
    $region2: #{tpu_custom_call.1} parent=1 // pred_check
      _
    $region3: #{tpu_custom_call.1} parent=1 // pred_check_branch
      %13 = sbr.rel (0) target = $region5
    $region4: #{tpu_custom_call.1} parent=1 // pred_region
      _
    $region5: #{tpu_custom_call.1} parent=1 // pred_fallthru
      _
    // Predicated region
    $region6: #{tpu_custom_call.1} parent=1 // pred_check
      _
    $region7: #{tpu_custom_call.1} parent=1 // pred_check_branch
      %15 = sbr.rel (0) target = $region9
    $region8: #{tpu_custom_call.1} parent=1 // pred_region
      _
    $region9: #{tpu_custom_call.1} parent=1 // pred_fallthru
      _
    // Predicated region
    $region10: #{tpu_custom_call.1} parent=1 // pred_check
      _
    $region11: #{tpu_custom_call.1} parent=1 // pred_check_branch
      %17 = sbr.rel (0) target = $region13
    $region12: #{tpu_custom_call.1} parent=1 // pred_region
      _
    $region13: #{tpu_custom_call.1} parent=1 // pred_fallthru
      _
    // Predicated region
    $region14: #{tpu_custom_call.1} parent=1 // pred_check
      _
    $region15: #{tpu_custom_call.1} parent=1 // pred_check_branch
      %19 = sbr.rel (0) target = $region17
    $region16: #{tpu_custom_call.1} parent=1 // pred_region
      %s21 = ssub.s32 4096, 4096
      %22 = vsyncadd [#allocation3], %s21
      %s23 = sshll.u32 [#allocation2], 4
      %s24 = int_to_ptr.vmem [resolvable:$true] %s23
      %29 = dma.hbm_to_vmem [thread:$0]  %s3, 4096, %s24, [#allocation3], 64, 64, 4
    $region17: #{tpu_custom_call.1} parent=1 // pred_fallthru
      _
    // Predicated region
    $region18: #{tpu_custom_call.1} parent=1 // pred_check
      _
    $region19: #{tpu_custom_call.1} parent=1 // pred_check_branch
      %31 = sbr.rel (0) target = $region21
    $region20: #{tpu_custom_call.1} parent=1 // pred_region
      _
    $region21: #{tpu_custom_call.1} parent=1 // pred_fallthru
      _
    // Predicated region
    $region22: #{tpu_custom_call.1} parent=1 // pred_check
      _
    $region23: #{tpu_custom_call.1} parent=1 // pred_check_branch
      %33 = sbr.rel (0) target = $region25
    $region24: #{tpu_custom_call.1} parent=1 // pred_region
      %34 = dma.done [#allocation3], 4096
    $region25: #{tpu_custom_call.1} parent=1 // pred_fallthru
      _
    %vm36 = vcmask 261120
    %v37 = vsel %vm36, -2.2, -1.8
    %vm38 = vcmask 523264
    %v39 = vsel %vm38, %v37, -1.4
    %vm40 = vcmask 785408
    %v41 = vsel %vm40, %v39, -1.0
    %v42 = vsel %vm36, -0.6, -0.2
    %v43 = vsel %vm38, %v42, 0.2
    %v44 = vsel %vm40, %v43, 0.6
    %v45 = vsel %vm36, 1.0, 1.4
    %v46 = vsel %vm38, %v45, 1.8
    %v47 = vsel %vm40, %v46, 2.2
    %v48 = vsel %vm38, -2.2, -1.8
    %v49 = vsel %vm38, -1.4, -1.0
    %v50 = vsel %vm38, -0.6, -0.2
    %v51 = vsel %vm38, 0.2, 0.6
    %v52 = vsel %vm38, 1.0, 1.4
    %v53 = vsel %vm38, 1.8, 2.2
    %v54 = vld [vmem:[%s0] sm:$0xff]
    %56 = vrot.lane.b32.xlu0 %v54, 32
    %v57 = vpop.permute.xlu0 %56
    %59 = vrot.lane.b32.xlu0 %v54, 64
    %v60 = vpop.permute.xlu0 %59
    %62 = vrot.lane.b32.xlu0 %v54, 96
    %v63 = vpop.permute.xlu0 %62
    %v65 = vsel %vm36, %v54, %v57
    %v66 = vsel %vm38, %v65, %v60
    %v67 = vsel %vm40, %v66, %v63
    %v68 = vlaneseq
    %v69 = vshrl.u32 %v68, 7
    %v70 = vsub.s32 0, %v69
    %v71 = vrot.slane %v41, %v70
    %v72 = vlaneseq
    %v73 = vshrl.u32 %v72, 7
    %v74 = vsub.s32 0, %v73
    %v75 = vrot.slane %v44, %v74
    %v76 = vlaneseq
    %v77 = vshrl.u32 %v76, 7
    %v78 = vsub.s32 0, %v77
    %v79 = vrot.slane %v47, %v78
    %v80 = vsub.f32 %v67, %v71
    %v81 = vsub.f32 %v67, %v75
    %v82 = vsub.f32 %v67, %v79
    %vm83 = vcmp.ge.f32.partialorder %v80, 0.0
    %vm84 = vcmp.ge.f32.partialorder %v81, 0.0
    %vm85 = vcmp.ge.f32.partialorder %v82, 0.0
    %vm86 = vcmp.lt.f32.partialorder %v80, 0.4
    %vm87 = vcmp.lt.f32.partialorder %v81, 0.4
    %vm88 = vcmp.lt.f32.partialorder %v82, 0.4
    %vm89 = vmand %vm83, %vm86
    %vm90 = vmand %vm84, %vm87
    %vm91 = vmand %vm85, %vm88
    %v92 = vsel %vm89, 1, 0
    %v93 = vsel %vm90, 1, 0
    %v94 = vsel %vm91, 1, 0
    %v95 = vcvt.s32.f32 %v92
    %v96 = vcvt.s32.f32 %v93
    %v97 = vcvt.s32.f32 %v94
    %v98 = vmul.f32 %v80, 2.5
    %v99 = vmul.f32 %v81, 2.5
    %v100 = vmul.f32 %v82, 2.5
    %101 = vrot.lane.b32.xlu0 %v95, 96
    %v102 = vpop.permute.xlu0 %101
    %103 = vrot.lane.b32.xlu0 %v96, 96
    %v104 = vpop.permute.xlu0 %103
    %105 = vrot.lane.b32.xlu0 %v97, 96
    %v106 = vpop.permute.xlu0 %105
    %v107 = vlaneseq
    %v108 = vand.u32 %v107, 127
    %vm109 = vcmp.lt.s32.totalorder %v108, 96
    %v110 = vsel %vm109, %v104, %v106
    %v111 = vsel %vm109, %v102, %v104
    %v112 = vsel %vm109, %v106, %v102
    %v113 = vmul.f32 %v98, %v95
    %v114 = vmul.f32 %v99, %v96
    %v115 = vmul.f32 %v100, %v97
    %v116 = vsub.f32 2.0, %v98
    %v117 = vsub.f32 2.0, %v99
    %v118 = vsub.f32 2.0, %v100
    %v119 = vmul.f32 %v116, %v111
    %v120 = vmul.f32 %v117, %v110
    %v121 = vmul.f32 %v118, %v112
    %v122 = vadd.f32 %v113, %v119
    %v123 = vadd.f32 %v114, %v120
    %v124 = vadd.f32 %v115, %v121
    %v125 = vmul.f32 %v80, 1.25
    %v126 = vmul.f32 %v81, 1.25
    %v127 = vmul.f32 %v82, 1.25
    %128 = vrot.lane.b32.xlu0 %v122, 96
    %v129 = vpop.permute.xlu0 %128
    %130 = vrot.lane.b32.xlu0 %v123, 96
    %v131 = vpop.permute.xlu0 %130
    %132 = vrot.lane.b32.xlu0 %v124, 96
    %v133 = vpop.permute.xlu0 %132
    %v134 = vsel %vm109, %v131, %v133
    %v135 = vsel %vm109, %v129, %v131
    %v136 = vsel %vm109, %v133, %v129
    %v137 = vmul.f32 %v125, %v122
    %v138 = vmul.f32 %v126, %v123
    %v139 = vmul.f32 %v127, %v124
    %v140 = vsub.f32 1.5, %v125
    %v141 = vsub.f32 1.5, %v126
    %v142 = vsub.f32 1.5, %v127
    %v143 = vmul.f32 %v140, %v135
    %v144 = vmul.f32 %v141, %v134
    %v145 = vmul.f32 %v142, %v136
    %v146 = vadd.f32 %v137, %v143
    %v147 = vadd.f32 %v138, %v144
    %v148 = vadd.f32 %v139, %v145
    %v149 = vmul.f32 %v80, 0.8333333
    %v150 = vmul.f32 %v81, 0.8333333
    %151 = vrot.lane.b32.xlu0 %v146, 96
    %v152 = vpop.permute.xlu0 %151
    %153 = vrot.lane.b32.xlu0 %v147, 96
    %v154 = vpop.permute.xlu0 %153
    %155 = vrot.lane.b32.xlu0 %v148, 96
    %v156 = vpop.permute.xlu0 %155
    %v157 = vsel %vm109, %v154, %v156
    %v158 = vsel %vm109, %v152, %v154
    %v159 = vmul.f32 %v149, %v146
    %v160 = vmul.f32 %v150, %v147
    %v161 = vsub.f32 1.3333334, %v149
    %v162 = vsub.f32 1.3333334, %v150
    %v163 = vmul.f32 %v161, %v158
    %v164 = vmul.f32 %v162, %v157
    %v165 = vadd.f32 %v159, %v163
    %v166 = vadd.f32 %v160, %v164
    %v167 = vpack.c.bf16 %v165, %v165
    %v168 = vpack.c.bf16 %v166, %v166
    %v169 = vsub.f32 0.0, %v54
    %v170 = vmul.f32 %v169, 1.442695
    %v171 = vpow.pop %v170
    %v172 = vadd.f32 %v171, 1.0
    %v173 = vrcp.pop %v172
    %v174 = vmul.f32 %v54, %v173
    %v175 = vld [vmem:[%s1] sm:$0xf]
    %v176 = vld [vmem:[%s1 + $0x4] sm:$0xf]
    %v177 = vld [vmem:[%s1 + $0x8] sm:$0xf]
    %v178 = vld [vmem:[%s1 + $0xc] sm:$0xf]
    %v179 = vld [vmem:[%s1 + $0x10] sm:$0xf]
    %v180 = vld [vmem:[%s1 + $0x14] sm:$0xf]
    %v181 = vld [vmem:[%s1 + $0x18] sm:$0xf]
    %v182 = vld [vmem:[%s1 + $0x1c] sm:$0xf]
    %v183 = vld [vmem:[%s1 + $0x20] sm:$0xf]
    %v184 = vld [vmem:[%s1 + $0x24] sm:$0xf]
    %v185 = vld [vmem:[%s1 + $0x28] sm:$0xf]
    %v186 = vld [vmem:[%s1 + $0x2c] sm:$0xf]
    %v187 = vld [vmem:[%s1 + $0x30] sm:$0xf]
    %v188 = vld [vmem:[%s1 + $0x34] sm:$0xf]
    %v189 = vld [vmem:[%s1 + $0x38] sm:$0xf]
    %v190 = vld [vmem:[%s1 + $0x3c] sm:$0xf]
    %v191 = vld [vmem:[%s1 + $0x40] sm:$0xf]
    %v192 = vld [vmem:[%s1 + $0x44] sm:$0xf]
    %v193 = vld [vmem:[%s1 + $0x48] sm:$0xf]
    %v194 = vld [vmem:[%s1 + $0x4c] sm:$0xf]
    %v195 = vld [vmem:[%s1 + $0x50] sm:$0xf]
    %v196 = vld [vmem:[%s1 + $0x54] sm:$0xf]
    %v197 = vld [vmem:[%s1 + $0x58] sm:$0xf]
    %v198 = vld [vmem:[%s1 + $0x5c] sm:$0xf]
    %v199 = vld [vmem:[%s1 + $0x60] sm:$0xf]
    %v200 = vld [vmem:[%s1 + $0x64] sm:$0xf]
    %v201 = vld [vmem:[%s1 + $0x68] sm:$0xf]
    %v202 = vld [vmem:[%s1 + $0x6c] sm:$0xf]
    %v203 = vld [vmem:[%s1 + $0x70] sm:$0xf]
    %v204 = vld [vmem:[%s1 + $0x74] sm:$0xf]
    %v205 = vld [vmem:[%s1 + $0x78] sm:$0xf]
    %v206 = vld [vmem:[%s1 + $0x7c] sm:$0xf]
    %v207 = vld [vmem:[%s2] sm:$0xff]
    %v208 = vld [vmem:[%s2 + $0x8] sm:$0xff]
    %v209 = vld [vmem:[%s2 + $0x10] sm:$0xff]
    %v210 = vld [vmem:[%s2 + $0x18] sm:$0xff]
    %v212 = vsel %vm36, %v174, 0
    %214 = vmatprep.subr.mxu0 0.0
    %215 = vmatpush1.msra.mxu0 0.0
    %216 = vmatprep.subr.mxu0 0.0
    %217 = vmatpush1.msra.mxu0 0.0
    %218 = vmatprep.subr.mxu0 0.0
    %219 = vmatpush1.msra.mxu0 0.0
    %220 = vmatprep.subr.mxu0 0.0
    %221 = vmatpush1.msra.mxu0 0.0
    %222 = vmatprep.subr.mxu0 0.0
    %223 = vmatpush1.msra.mxu0 0.0
    %224 = vmatprep.subr.mxu0 0.0
    %225 = vmatpush1.msra.mxu0 0.0
    %226 = vmatprep.subr.mxu0 0.0
    %227 = vmatpush1.msra.mxu0 0.0
    %228 = vmatprep.subr.mxu0 0.0
    %229 = vmatpush1.msra.mxu0 0.0
    %230 = vmatprep.subr.mxu0 0.0
    %231 = vmatpush1.msra.mxu0 0.0
    %232 = vmatprep.subr.mxu0 0.0
    %233 = vmatpush1.msra.mxu0 0.0
    %234 = vmatprep.subr.mxu0 0.0
    %235 = vmatpush1.msra.mxu0 0.0
    %236 = vmatprep.subr.mxu0 0.0
    %237 = vmatpush1.msra.mxu0 0.0
    %238 = vmatprep.subr.mxu0 0.0
    %239 = vmatpush1.msra.mxu0 %v210
    %240 = vmatprep.subr.mxu0 0.0
    %241 = vmatpush1.msra.mxu0 %v209
    %242 = vmatprep.subr.mxu0 0.0
    %243 = vmatpush1.msra.mxu0 %v208
    %244 = vmatprep.subr.mxu0 0.0
    %245 = vmatpush1.msra.mxu0 %v207
    %246 = vmatprep.subr.mxu0 0.0
    %247 = vmatpush2.msra.mxu0 0.0
    %248 = vmatprep.subr.mxu0 0.0
    %249 = vmatpush2.msra.mxu0 0.0
    %250 = vmatprep.subr.mxu0 0.0
    %251 = vmatpush2.msra.mxu0 0.0
    %252 = vmatprep.subr.mxu0 0.0
    %253 = vmatpush2.msra.mxu0 0.0
    %254 = vmatprep.subr.mxu0 0.0
    %255 = vmatpush2.msra.mxu0 0.0
    %256 = vmatprep.subr.mxu0 0.0
    %257 = vmatpush2.msra.mxu0 0.0
    %258 = vmatprep.subr.mxu0 0.0
    %259 = vmatpush2.msra.mxu0 0.0
    %260 = vmatprep.subr.mxu0 0.0
    %261 = vmatpush2.msra.mxu0 0.0
    %262 = vmatprep.subr.mxu0 0.0
    %263 = vmatpush2.msra.mxu0 0.0
    %264 = vmatprep.subr.mxu0 0.0
    %265 = vmatpush2.msra.mxu0 0.0
    %266 = vmatprep.subr.mxu0 0.0
    %267 = vmatpush2.msra.mxu0 0.0
    %268 = vmatprep.subr.mxu0 0.0
    %269 = vmatpush2.msra.mxu0 0.0
    %270 = vmatprep.subr.mxu0 0.0
    %271 = vmatpush2.msra.mxu0 0.0
    %272 = vmatprep.subr.mxu0 0.0
    %273 = vmatpush2.msra.mxu0 0.0
    %274 = vmatprep.subr.mxu0 0.0
    %275 = vmatpush2.msra.mxu0 0.0
    %276 = vmatprep.subr.mxu0 0.0
    %277 = vmatpush2.msra.mxu0 0.0
    %278 = vmatprep.mubr.f32.mxu0 0.0
    %279 = vmatmul.mubr.f32.gmra.mxu0 %v212
    %v280 = vpop.f32.mrf.mxu0
    %v281 = vadd.f32 0.0, %v280
    %v282 = vpop.f32.mrf.mxu0
    %283 = vdwg.mxu0
    %v316 = vunpack.c.l.b16 %v175
    %v317 = vunpack.c.l.b16 %v176
    %v318 = vunpack.c.l.b16 %v177
    %v319 = vunpack.c.l.b16 %v178
    %v320 = vunpack.c.l.b16 %v179
    %v321 = vunpack.c.l.b16 %v180
    %v322 = vunpack.c.l.b16 %v181
    %v323 = vunpack.c.l.b16 %v182
    %v324 = vunpack.c.l.b16 %v183
    %v325 = vunpack.c.l.b16 %v184
    %v326 = vunpack.c.l.b16 %v185
    %v327 = vunpack.c.l.b16 %v186
    %v328 = vunpack.c.l.b16 %v187
    %v329 = vunpack.c.l.b16 %v188
    %v330 = vunpack.c.l.b16 %v189
    %v331 = vunpack.c.l.b16 %v190
    %v332 = vunpack.c.l.b16 %v191
    %v333 = vunpack.c.l.b16 %v192
    %v334 = vunpack.c.l.b16 %v193
    %v335 = vunpack.c.l.b16 %v194
    %v336 = vunpack.c.l.b16 %v195
    %v337 = vunpack.c.l.b16 %v196
    %v338 = vunpack.c.l.b16 %v197
    %v339 = vunpack.c.l.b16 %v198
    %v340 = vunpack.c.l.b16 %v199
    %v341 = vunpack.c.l.b16 %v200
    %v342 = vunpack.c.l.b16 %v201
    %v343 = vunpack.c.l.b16 %v202
    %v344 = vunpack.c.l.b16 %v203
    %v345 = vunpack.c.l.b16 %v204
    %v346 = vunpack.c.l.b16 %v205
    %v347 = vunpack.c.l.b16 %v206
    %v348 = vpack.c.b16 %v317, %v316
    %v349 = vpack.c.b16 %v319, %v318
    %v350 = vpack.c.b16 %v321, %v320
    %v351 = vpack.c.b16 %v323, %v322
    %v352 = vpack.c.b16 %v325, %v324
    %v353 = vpack.c.b16 %v327, %v326
    %v354 = vpack.c.b16 %v329, %v328
    %v355 = vpack.c.b16 %v331, %v330
    %v356 = vpack.c.b16 %v333, %v332
    %v357 = vpack.c.b16 %v335, %v334
    %v358 = vpack.c.b16 %v337, %v336
    %v359 = vpack.c.b16 %v339, %v338
    %v360 = vpack.c.b16 %v341, %v340
    %v361 = vpack.c.b16 %v343, %v342
    %v362 = vpack.c.b16 %v345, %v344
    %v363 = vpack.c.b16 %v347, %v346
    %380 = vmatprep.subr.bf16.mxu0 0
    %381 = vmatpush1.bf16.msra.mxu0 %v355
    %382 = vmatprep.subr.bf16.mxu0 0
    %383 = vmatpush1.bf16.msra.mxu0 %v354
    %384 = vmatprep.subr.bf16.mxu0 0
    %385 = vmatpush1.bf16.msra.mxu0 %v353
    %386 = vmatprep.subr.bf16.mxu0 0
    %387 = vmatpush1.bf16.msra.mxu0 %v352
    %388 = vmatprep.subr.bf16.mxu0 0
    %389 = vmatpush1.bf16.msra.mxu0 %v351
    %390 = vmatprep.subr.bf16.mxu0 0
    %391 = vmatpush1.bf16.msra.mxu0 %v350
    %392 = vmatprep.subr.bf16.mxu0 0
    %393 = vmatpush1.bf16.msra.mxu0 %v349
    %394 = vmatprep.subr.bf16.mxu0 0
    %395 = vmatpush1.bf16.msra.mxu0 %v348
    %396 = vmatprep.subr.bf16.mxu0 0
    %397 = vmatpush2.bf16.msra.mxu0 %v363
    %398 = vmatprep.subr.bf16.mxu0 0
    %399 = vmatpush2.bf16.msra.mxu0 %v362
    %400 = vmatprep.subr.bf16.mxu0 0
    %401 = vmatpush2.bf16.msra.mxu0 %v361
    %402 = vmatprep.subr.bf16.mxu0 0
    %403 = vmatpush2.bf16.msra.mxu0 %v360
    %404 = vmatprep.subr.bf16.mxu0 0
    %405 = vmatpush2.bf16.msra.mxu0 %v359
    %406 = vmatprep.subr.bf16.mxu0 0
    %407 = vmatpush2.bf16.msra.mxu0 %v358
    %408 = vmatprep.subr.bf16.mxu0 0
    %409 = vmatpush2.bf16.msra.mxu0 %v357
    %410 = vmatprep.subr.bf16.mxu0 0
    %411 = vmatpush2.bf16.msra.mxu0 %v356
    %412 = vmatprep.mubr.bf16.mxu0 %v168
    %413 = vmatmul.mubr.bf16.gmra.mxu0 %v167
    %v414 = vpop.f32.mrf.mxu0
    %v415 = vadd.f32 %v281, %v414
    %v416 = vpop.f32.mrf.mxu0
    %v417 = vpop.f32.mrf.mxu0
    %v418 = vpop.f32.mrf.mxu0
    %419 = vdwg.mxu0
    %421 = vrot.lane.b32.xlu0 %v415, 64
    %v422 = vpop.permute.xlu0 %421
    %v424 = vsel %vm38, %v415, %v422
    %v425 = vlaneseq
    %v426 = vshrl.u32 %v425, 7
    %v427 = vsub.s32 0, %v426
    %v428 = vrot.slane %v48, %v427
    %v429 = vlaneseq
    %v430 = vshrl.u32 %v429, 7
    %v431 = vsub.s32 0, %v430
    %v432 = vrot.slane %v49, %v431
    %v433 = vlaneseq
    %v434 = vshrl.u32 %v433, 7
    %v435 = vsub.s32 0, %v434
    %v436 = vrot.slane %v50, %v435
    %v437 = vlaneseq
    %v438 = vshrl.u32 %v437, 7
    %v439 = vsub.s32 0, %v438
    %v440 = vrot.slane %v51, %v439
    %v441 = vlaneseq
    %v442 = vshrl.u32 %v441, 7
    %v443 = vsub.s32 0, %v442
    %v444 = vrot.slane %v52, %v443
    %v445 = vlaneseq
    %v446 = vshrl.u32 %v445, 7
    %v447 = vsub.s32 0, %v446
    %v448 = vrot.slane %v53, %v447
    %v449 = vsub.f32 %v424, %v428
    %v450 = vsub.f32 %v424, %v432
    %v451 = vsub.f32 %v424, %v436
    %v452 = vsub.f32 %v424, %v440
    %v453 = vsub.f32 %v424, %v444
    %v454 = vsub.f32 %v424, %v448
    %vm455 = vcmp.ge.f32.partialorder %v449, 0.0
    %vm456 = vcmp.ge.f32.partialorder %v450, 0.0
    %vm457 = vcmp.ge.f32.partialorder %v451, 0.0
    %vm458 = vcmp.ge.f32.partialorder %v452, 0.0
    %vm459 = vcmp.ge.f32.partialorder %v453, 0.0
    %vm460 = vcmp.ge.f32.partialorder %v454, 0.0
    %vm461 = vcmp.lt.f32.partialorder %v449, 0.4
    %vm462 = vcmp.lt.f32.partialorder %v450, 0.4
    %vm463 = vcmp.lt.f32.partialorder %v451, 0.4
    %vm464 = vcmp.lt.f32.partialorder %v452, 0.4
    %vm465 = vcmp.lt.f32.partialorder %v453, 0.4
    %vm466 = vcmp.lt.f32.partialorder %v454, 0.4
    %vm467 = vmand %vm455, %vm461
    %vm468 = vmand %vm456, %vm462
    %vm469 = vmand %vm457, %vm463
    %vm470 = vmand %vm458, %vm464
    %vm471 = vmand %vm459, %vm465
    %vm472 = vmand %vm460, %vm466
    %v473 = vsel %vm467, 1, 0
    %v474 = vsel %vm468, 1, 0
    %v475 = vsel %vm469, 1, 0
    %v476 = vsel %vm470, 1, 0
    %v477 = vsel %vm471, 1, 0
    %v478 = vsel %vm472, 1, 0
    %v479 = vcvt.s32.f32 %v473
    %v480 = vcvt.s32.f32 %v474
    %v481 = vcvt.s32.f32 %v475
    %v482 = vcvt.s32.f32 %v476
    %v483 = vcvt.s32.f32 %v477
    %v484 = vcvt.s32.f32 %v478
    %v485 = vmul.f32 %v449, 2.5
    %v486 = vmul.f32 %v450, 2.5
    %v487 = vmul.f32 %v451, 2.5
    %v488 = vmul.f32 %v452, 2.5
    %v489 = vmul.f32 %v453, 2.5
    %v490 = vmul.f32 %v454, 2.5
    %491 = vrot.lane.b32.xlu0 %v479, 64
    %v492 = vpop.permute.xlu0 %491
    %493 = vrot.lane.b32.xlu0 %v480, 64
    %v494 = vpop.permute.xlu0 %493
    %495 = vrot.lane.b32.xlu0 %v481, 64
    %v496 = vpop.permute.xlu0 %495
    %497 = vrot.lane.b32.xlu0 %v482, 64
    %v498 = vpop.permute.xlu0 %497
    %499 = vrot.lane.b32.xlu0 %v483, 64
    %v500 = vpop.permute.xlu0 %499
    %501 = vrot.lane.b32.xlu0 %v484, 64
    %v502 = vpop.permute.xlu0 %501
    %vm503 = vcmp.lt.s32.totalorder %v108, 64
    %v504 = vsel %vm503, %v500, %v502
    %v505 = vsel %vm503, %v498, %v500
    %v506 = vsel %vm503, %v496, %v498
    %v507 = vsel %vm503, %v494, %v496
    %v508 = vsel %vm503, %v492, %v494
    %v509 = vsel %vm503, %v502, %v492
    %v510 = vmul.f32 %v485, %v479
    %v511 = vmul.f32 %v486, %v480
    %v512 = vmul.f32 %v487, %v481
    %v513 = vmul.f32 %v488, %v482
    %v514 = vmul.f32 %v489, %v483
    %v515 = vmul.f32 %v490, %v484
    %v516 = vsub.f32 2.0, %v485
    %v517 = vsub.f32 2.0, %v486
    %v518 = vsub.f32 2.0, %v487
    %v519 = vsub.f32 2.0, %v488
    %v520 = vsub.f32 2.0, %v489
    %v521 = vsub.f32 2.0, %v490
    %v522 = vmul.f32 %v516, %v508
    %v523 = vmul.f32 %v517, %v507
    %v524 = vmul.f32 %v518, %v506
    %v525 = vmul.f32 %v519, %v505
    %v526 = vmul.f32 %v520, %v504
    %v527 = vmul.f32 %v521, %v509
    %v528 = vadd.f32 %v510, %v522
    %v529 = vadd.f32 %v511, %v523
    %v530 = vadd.f32 %v512, %v524
    %v531 = vadd.f32 %v513, %v525
    %v532 = vadd.f32 %v514, %v526
    %v533 = vadd.f32 %v515, %v527
    %v534 = vmul.f32 %v449, 1.25
    %v535 = vmul.f32 %v450, 1.25
    %v536 = vmul.f32 %v451, 1.25
    %v537 = vmul.f32 %v452, 1.25
    %v538 = vmul.f32 %v453, 1.25
    %539 = vrot.lane.b32.xlu0 %v528, 64
    %v540 = vpop.permute.xlu0 %539
    %541 = vrot.lane.b32.xlu0 %v529, 64
    %v542 = vpop.permute.xlu0 %541
    %543 = vrot.lane.b32.xlu0 %v530, 64
    %v544 = vpop.permute.xlu0 %543
    %545 = vrot.lane.b32.xlu0 %v531, 64
    %v546 = vpop.permute.xlu0 %545
    %547 = vrot.lane.b32.xlu0 %v532, 64
    %v548 = vpop.permute.xlu0 %547
    %549 = vrot.lane.b32.xlu0 %v533, 64
    %v550 = vpop.permute.xlu0 %549
    %v551 = vsel %vm503, %v548, %v550
    %v552 = vsel %vm503, %v546, %v548
    %v553 = vsel %vm503, %v544, %v546
    %v554 = vsel %vm503, %v542, %v544
    %v555 = vsel %vm503, %v540, %v542
    %v556 = vmul.f32 %v534, %v528
    %v557 = vmul.f32 %v535, %v529
    %v558 = vmul.f32 %v536, %v530
    %v559 = vmul.f32 %v537, %v531
    %v560 = vmul.f32 %v538, %v532
    %v561 = vsub.f32 1.5, %v534
    %v562 = vsub.f32 1.5, %v535
    %v563 = vsub.f32 1.5, %v536
    %v564 = vsub.f32 1.5, %v537
    %v565 = vsub.f32 1.5, %v538
    %v566 = vmul.f32 %v561, %v555
    %v567 = vmul.f32 %v562, %v554
    %v568 = vmul.f32 %v563, %v553
    %v569 = vmul.f32 %v564, %v552
    %v570 = vmul.f32 %v565, %v551
    %v571 = vadd.f32 %v556, %v566
    %v572 = vadd.f32 %v557, %v567
    %v573 = vadd.f32 %v558, %v568
    %v574 = vadd.f32 %v559, %v569
    %v575 = vadd.f32 %v560, %v570
    %v576 = vmul.f32 %v449, 0.8333333
    %v577 = vmul.f32 %v450, 0.8333333
    %v578 = vmul.f32 %v451, 0.8333333
    %v579 = vmul.f32 %v452, 0.8333333
    %580 = vrot.lane.b32.xlu0 %v571, 64
    %v581 = vpop.permute.xlu0 %580
    %582 = vrot.lane.b32.xlu0 %v572, 64
    %v583 = vpop.permute.xlu0 %582
    %584 = vrot.lane.b32.xlu0 %v573, 64
    %v585 = vpop.permute.xlu0 %584
    %586 = vrot.lane.b32.xlu0 %v574, 64
    %v587 = vpop.permute.xlu0 %586
    %588 = vrot.lane.b32.xlu0 %v575, 64
    %v589 = vpop.permute.xlu0 %588
    %v590 = vsel %vm503, %v587, %v589
    %v591 = vsel %vm503, %v585, %v587
    %v592 = vsel %vm503, %v583, %v585
    %v593 = vsel %vm503, %v581, %v583
    %v594 = vmul.f32 %v576, %v571
    %v595 = vmul.f32 %v577, %v572
    %v596 = vmul.f32 %v578, %v573
    %v597 = vmul.f32 %v579, %v574
    %v598 = vsub.f32 1.3333334, %v576
    %v599 = vsub.f32 1.3333334, %v577
    %v600 = vsub.f32 1.3333334, %v578
    %v601 = vsub.f32 1.3333334, %v579
    %v602 = vmul.f32 %v598, %v593
    %v603 = vmul.f32 %v599, %v592
    %v604 = vmul.f32 %v600, %v591
    %v605 = vmul.f32 %v601, %v590
    %v606 = vadd.f32 %v594, %v602
    %v607 = vadd.f32 %v595, %v603
    %v608 = vadd.f32 %v596, %v604
    %v609 = vadd.f32 %v597, %v605
    %v610 = vpack.c.bf16 %v606, %v606
    %v611 = vpack.c.bf16 %v607, %v607
    %v612 = vpack.c.bf16 %v608, %v608
    %v613 = vpack.c.bf16 %v609, %v609
    %v614 = vsub.f32 0.0, %v415
    %v615 = vmul.f32 %v614, 1.442695
    %v616 = vpow.pop %v615
    %v617 = vadd.f32 %v616, 1.0
    %v618 = vrcp.pop %v617
    %v619 = vmul.f32 %v415, %v618
    %v620 = vld [vmem:[#allocation2] sm:$0xf]
    %v621 = vld [vmem:[#allocation2 + $0x4] sm:$0xf]
    %v622 = vld [vmem:[#allocation2 + $0x8] sm:$0xf]
    %v623 = vld [vmem:[#allocation2 + $0xc] sm:$0xf]
    %v624 = vld [vmem:[#allocation2 + $0x10] sm:$0xf]
    %v625 = vld [vmem:[#allocation2 + $0x14] sm:$0xf]
    %v626 = vld [vmem:[#allocation2 + $0x18] sm:$0xf]
    %v627 = vld [vmem:[#allocation2 + $0x1c] sm:$0xf]
    %v628 = vld [vmem:[#allocation2 + $0x20] sm:$0xf]
    %v629 = vld [vmem:[#allocation2 + $0x24] sm:$0xf]
    %v630 = vld [vmem:[#allocation2 + $0x28] sm:$0xf]
    %v631 = vld [vmem:[#allocation2 + $0x2c] sm:$0xf]
    %v632 = vld [vmem:[#allocation2 + $0x30] sm:$0xf]
    %v633 = vld [vmem:[#allocation2 + $0x34] sm:$0xf]
    %v634 = vld [vmem:[#allocation2 + $0x38] sm:$0xf]
    %v635 = vld [vmem:[#allocation2 + $0x3c] sm:$0xf]
    %v636 = vld [vmem:[#allocation2 + $0x40] sm:$0xf]
    %v637 = vld [vmem:[#allocation2 + $0x44] sm:$0xf]
    %v638 = vld [vmem:[#allocation2 + $0x48] sm:$0xf]
    %v639 = vld [vmem:[#allocation2 + $0x4c] sm:$0xf]
    %v640 = vld [vmem:[#allocation2 + $0x50] sm:$0xf]
    %v641 = vld [vmem:[#allocation2 + $0x54] sm:$0xf]
    %v642 = vld [vmem:[#allocation2 + $0x58] sm:$0xf]
    %v643 = vld [vmem:[#allocation2 + $0x5c] sm:$0xf]
    %v644 = vld [vmem:[#allocation2 + $0x60] sm:$0xf]
    %v645 = vld [vmem:[#allocation2 + $0x64] sm:$0xf]
    %v646 = vld [vmem:[#allocation2 + $0x68] sm:$0xf]
    %v647 = vld [vmem:[#allocation2 + $0x6c] sm:$0xf]
    %v648 = vld [vmem:[#allocation2 + $0x70] sm:$0xf]
    %v649 = vld [vmem:[#allocation2 + $0x74] sm:$0xf]
    %v650 = vld [vmem:[#allocation2 + $0x78] sm:$0xf]
    %v651 = vld [vmem:[#allocation2 + $0x7c] sm:$0xf]
    %v652 = vld [vmem:[#allocation2 + $0x80] sm:$0xf]
    %v653 = vld [vmem:[#allocation2 + $0x84] sm:$0xf]
    %v654 = vld [vmem:[#allocation2 + $0x88] sm:$0xf]
    %v655 = vld [vmem:[#allocation2 + $0x8c] sm:$0xf]
    %v656 = vld [vmem:[#allocation2 + $0x90] sm:$0xf]
    %v657 = vld [vmem:[#allocation2 + $0x94] sm:$0xf]
    %v658 = vld [vmem:[#allocation2 + $0x98] sm:$0xf]
    %v659 = vld [vmem:[#allocation2 + $0x9c] sm:$0xf]
    %v660 = vld [vmem:[#allocation2 + $0xa0] sm:$0xf]
    %v661 = vld [vmem:[#allocation2 + $0xa4] sm:$0xf]
    %v662 = vld [vmem:[#allocation2 + $0xa8] sm:$0xf]
    %v663 = vld [vmem:[#allocation2 + $0xac] sm:$0xf]
    %v664 = vld [vmem:[#allocation2 + $0xb0] sm:$0xf]
    %v665 = vld [vmem:[#allocation2 + $0xb4] sm:$0xf]
    %v666 = vld [vmem:[#allocation2 + $0xb8] sm:$0xf]
    %v667 = vld [vmem:[#allocation2 + $0xbc] sm:$0xf]
    %v668 = vld [vmem:[#allocation2 + $0xc0] sm:$0xf]
    %v669 = vld [vmem:[#allocation2 + $0xc4] sm:$0xf]
    %v670 = vld [vmem:[#allocation2 + $0xc8] sm:$0xf]
    %v671 = vld [vmem:[#allocation2 + $0xcc] sm:$0xf]
    %v672 = vld [vmem:[#allocation2 + $0xd0] sm:$0xf]
    %v673 = vld [vmem:[#allocation2 + $0xd4] sm:$0xf]
    %v674 = vld [vmem:[#allocation2 + $0xd8] sm:$0xf]
    %v675 = vld [vmem:[#allocation2 + $0xdc] sm:$0xf]
    %v676 = vld [vmem:[#allocation2 + $0xe0] sm:$0xf]
    %v677 = vld [vmem:[#allocation2 + $0xe4] sm:$0xf]
    %v678 = vld [vmem:[#allocation2 + $0xe8] sm:$0xf]
    %v679 = vld [vmem:[#allocation2 + $0xec] sm:$0xf]
    %v680 = vld [vmem:[#allocation2 + $0xf0] sm:$0xf]
    %v681 = vld [vmem:[#allocation2 + $0xf4] sm:$0xf]
    %v682 = vld [vmem:[#allocation2 + $0xf8] sm:$0xf]
    %v683 = vld [vmem:[#allocation2 + $0xfc] sm:$0xf]
    %v684 = vld [vmem:[%s4] sm:$0xff]
    %v685 = vld [vmem:[%s4 + $0x8] sm:$0xff]
    %v686 = vld [vmem:[%s4 + $0x10] sm:$0xff]
    %v687 = vld [vmem:[%s4 + $0x18] sm:$0xff]
    %v688 = vld [vmem:[%s4 + $0x20] sm:$0xff]
    %v689 = vld [vmem:[%s4 + $0x28] sm:$0xff]
    %v690 = vld [vmem:[%s4 + $0x30] sm:$0xff]
    %v691 = vld [vmem:[%s4 + $0x38] sm:$0xff]
    %v693 = vsel %vm38, %v619, 0
    %695 = vmatprep.subr.mxu0 0.0
    %696 = vmatpush1.msra.mxu0 0.0
    %697 = vmatprep.subr.mxu0 0.0
    %698 = vmatpush1.msra.mxu0 0.0
    %699 = vmatprep.subr.mxu0 0.0
    %700 = vmatpush1.msra.mxu0 0.0
    %701 = vmatprep.subr.mxu0 0.0
    %702 = vmatpush1.msra.mxu0 0.0
    %703 = vmatprep.subr.mxu0 0.0
    %704 = vmatpush1.msra.mxu0 0.0
    %705 = vmatprep.subr.mxu0 0.0
    %706 = vmatpush1.msra.mxu0 0.0
    %707 = vmatprep.subr.mxu0 0.0
    %708 = vmatpush1.msra.mxu0 0.0
    %709 = vmatprep.subr.mxu0 0.0
    %710 = vmatpush1.msra.mxu0 0.0
    %711 = vmatprep.subr.mxu0 0.0
    %712 = vmatpush1.msra.mxu0 %v691
    %713 = vmatprep.subr.mxu0 0.0
    %714 = vmatpush1.msra.mxu0 %v690
    %715 = vmatprep.subr.mxu0 0.0
    %716 = vmatpush1.msra.mxu0 %v689
    %717 = vmatprep.subr.mxu0 0.0
    %718 = vmatpush1.msra.mxu0 %v688
    %719 = vmatprep.subr.mxu0 0.0
    %720 = vmatpush1.msra.mxu0 %v687
    %721 = vmatprep.subr.mxu0 0.0
    %722 = vmatpush1.msra.mxu0 %v686
    %723 = vmatprep.subr.mxu0 0.0
    %724 = vmatpush1.msra.mxu0 %v685
    %725 = vmatprep.subr.mxu0 0.0
    %726 = vmatpush1.msra.mxu0 %v684
    %727 = vmatprep.subr.mxu0 0.0
    %728 = vmatpush2.msra.mxu0 0.0
    %729 = vmatprep.subr.mxu0 0.0
    %730 = vmatpush2.msra.mxu0 0.0
    %731 = vmatprep.subr.mxu0 0.0
    %732 = vmatpush2.msra.mxu0 0.0
    %733 = vmatprep.subr.mxu0 0.0
    %734 = vmatpush2.msra.mxu0 0.0
    %735 = vmatprep.subr.mxu0 0.0
    %736 = vmatpush2.msra.mxu0 0.0
    %737 = vmatprep.subr.mxu0 0.0
    %738 = vmatpush2.msra.mxu0 0.0
    %739 = vmatprep.subr.mxu0 0.0
    %740 = vmatpush2.msra.mxu0 0.0
    %741 = vmatprep.subr.mxu0 0.0
    %742 = vmatpush2.msra.mxu0 0.0
    %743 = vmatprep.subr.mxu0 0.0
    %744 = vmatpush2.msra.mxu0 0.0
    %745 = vmatprep.subr.mxu0 0.0
    %746 = vmatpush2.msra.mxu0 0.0
    %747 = vmatprep.subr.mxu0 0.0
    %748 = vmatpush2.msra.mxu0 0.0
    %749 = vmatprep.subr.mxu0 0.0
    %750 = vmatpush2.msra.mxu0 0.0
    %751 = vmatprep.subr.mxu0 0.0
    %752 = vmatpush2.msra.mxu0 0.0
    %753 = vmatprep.subr.mxu0 0.0
    %754 = vmatpush2.msra.mxu0 0.0
    %755 = vmatprep.subr.mxu0 0.0
    %756 = vmatpush2.msra.mxu0 0.0
    %757 = vmatprep.subr.mxu0 0.0
    %758 = vmatpush2.msra.mxu0 0.0
    %759 = vmatprep.mubr.f32.mxu0 0.0
    %760 = vmatmul.mubr.f32.gmra.mxu0 %v693
    %v761 = vpop.f32.mrf.mxu0
    %v762 = vadd.f32 0.0, %v761
    %v763 = vpop.f32.mrf.mxu0
    %764 = vdwg.mxu0
    %v829 = vunpack.c.l.b16 %v620
    %v830 = vunpack.c.l.b16 %v621
    %v831 = vunpack.c.l.b16 %v622
    %v832 = vunpack.c.l.b16 %v623
    %v833 = vunpack.c.l.b16 %v624
    %v834 = vunpack.c.l.b16 %v625
    %v835 = vunpack.c.l.b16 %v626
    %v836 = vunpack.c.l.b16 %v627
    %v837 = vunpack.c.l.b16 %v628
    %v838 = vunpack.c.l.b16 %v629
    %v839 = vunpack.c.l.b16 %v630
    %v840 = vunpack.c.l.b16 %v631
    %v841 = vunpack.c.l.b16 %v632
    %v842 = vunpack.c.l.b16 %v633
    %v843 = vunpack.c.l.b16 %v634
    %v844 = vunpack.c.l.b16 %v635
    %v845 = vunpack.c.l.b16 %v636
    %v846 = vunpack.c.l.b16 %v637
    %v847 = vunpack.c.l.b16 %v638
    %v848 = vunpack.c.l.b16 %v639
    %v849 = vunpack.c.l.b16 %v640
    %v850 = vunpack.c.l.b16 %v641
    %v851 = vunpack.c.l.b16 %v642
    %v852 = vunpack.c.l.b16 %v643
    %v853 = vunpack.c.l.b16 %v644
    %v854 = vunpack.c.l.b16 %v645
    %v855 = vunpack.c.l.b16 %v646
    %v856 = vunpack.c.l.b16 %v647
    %v857 = vunpack.c.l.b16 %v648
    %v858 = vunpack.c.l.b16 %v649
    %v859 = vunpack.c.l.b16 %v650
    %v860 = vunpack.c.l.b16 %v651
    %v861 = vunpack.c.l.b16 %v652
    %v862 = vunpack.c.l.b16 %v653
    %v863 = vunpack.c.l.b16 %v654
    %v864 = vunpack.c.l.b16 %v655
    %v865 = vunpack.c.l.b16 %v656
    %v866 = vunpack.c.l.b16 %v657
    %v867 = vunpack.c.l.b16 %v658
    %v868 = vunpack.c.l.b16 %v659
    %v869 = vunpack.c.l.b16 %v660
    %v870 = vunpack.c.l.b16 %v661
    %v871 = vunpack.c.l.b16 %v662
    %v872 = vunpack.c.l.b16 %v663
    %v873 = vunpack.c.l.b16 %v664
    %v874 = vunpack.c.l.b16 %v665
    %v875 = vunpack.c.l.b16 %v666
    %v876 = vunpack.c.l.b16 %v667
    %v877 = vunpack.c.l.b16 %v668
    %v878 = vunpack.c.l.b16 %v669
    %v879 = vunpack.c.l.b16 %v670
    %v880 = vunpack.c.l.b16 %v671
    %v881 = vunpack.c.l.b16 %v672
    %v882 = vunpack.c.l.b16 %v673
    %v883 = vunpack.c.l.b16 %v674
    %v884 = vunpack.c.l.b16 %v675
    %v885 = vunpack.c.l.b16 %v676
    %v886 = vunpack.c.l.b16 %v677
    %v887 = vunpack.c.l.b16 %v678
    %v888 = vunpack.c.l.b16 %v679
    %v889 = vunpack.c.l.b16 %v680
    %v890 = vunpack.c.l.b16 %v681
    %v891 = vunpack.c.l.b16 %v682
    %v892 = vunpack.c.l.b16 %v683
    %v893 = vpack.c.b16 %v830, %v829
    %v894 = vpack.c.b16 %v832, %v831
    %v895 = vpack.c.b16 %v834, %v833
    %v896 = vpack.c.b16 %v836, %v835
    %v897 = vpack.c.b16 %v838, %v837
    %v898 = vpack.c.b16 %v840, %v839
    %v899 = vpack.c.b16 %v842, %v841
    %v900 = vpack.c.b16 %v844, %v843
    %v901 = vpack.c.b16 %v846, %v845
    %v902 = vpack.c.b16 %v848, %v847
    %v903 = vpack.c.b16 %v850, %v849
    %v904 = vpack.c.b16 %v852, %v851
    %v905 = vpack.c.b16 %v854, %v853
    %v906 = vpack.c.b16 %v856, %v855
    %v907 = vpack.c.b16 %v858, %v857
    %v908 = vpack.c.b16 %v860, %v859
    %v909 = vpack.c.b16 %v862, %v861
    %v910 = vpack.c.b16 %v864, %v863
    %v911 = vpack.c.b16 %v866, %v865
    %v912 = vpack.c.b16 %v868, %v867
    %v913 = vpack.c.b16 %v870, %v869
    %v914 = vpack.c.b16 %v872, %v871
    %v915 = vpack.c.b16 %v874, %v873
    %v916 = vpack.c.b16 %v876, %v875
    %v917 = vpack.c.b16 %v878, %v877
    %v918 = vpack.c.b16 %v880, %v879
    %v919 = vpack.c.b16 %v882, %v881
    %v920 = vpack.c.b16 %v884, %v883
    %v921 = vpack.c.b16 %v886, %v885
    %v922 = vpack.c.b16 %v888, %v887
    %v923 = vpack.c.b16 %v890, %v889
    %v924 = vpack.c.b16 %v892, %v891
    %957 = vmatprep.subr.bf16.mxu0 0
    %958 = vmatpush1.bf16.msra.mxu0 %v900
    %959 = vmatprep.subr.bf16.mxu0 0
    %960 = vmatpush1.bf16.msra.mxu0 %v899
    %961 = vmatprep.subr.bf16.mxu0 0
    %962 = vmatpush1.bf16.msra.mxu0 %v898
    %963 = vmatprep.subr.bf16.mxu0 0
    %964 = vmatpush1.bf16.msra.mxu0 %v897
    %965 = vmatprep.subr.bf16.mxu0 0
    %966 = vmatpush1.bf16.msra.mxu0 %v896
    %967 = vmatprep.subr.bf16.mxu0 0
    %968 = vmatpush1.bf16.msra.mxu0 %v895
    %969 = vmatprep.subr.bf16.mxu0 0
    %970 = vmatpush1.bf16.msra.mxu0 %v894
    %971 = vmatprep.subr.bf16.mxu0 0
    %972 = vmatpush1.bf16.msra.mxu0 %v893
    %973 = vmatprep.subr.bf16.mxu0 0
    %974 = vmatpush2.bf16.msra.mxu0 %v908
    %975 = vmatprep.subr.bf16.mxu0 0
    %976 = vmatpush2.bf16.msra.mxu0 %v907
    %977 = vmatprep.subr.bf16.mxu0 0
    %978 = vmatpush2.bf16.msra.mxu0 %v906
    %979 = vmatprep.subr.bf16.mxu0 0
    %980 = vmatpush2.bf16.msra.mxu0 %v905
    %981 = vmatprep.subr.bf16.mxu0 0
    %982 = vmatpush2.bf16.msra.mxu0 %v904
    %983 = vmatprep.subr.bf16.mxu0 0
    %984 = vmatpush2.bf16.msra.mxu0 %v903
    %985 = vmatprep.subr.bf16.mxu0 0
    %986 = vmatpush2.bf16.msra.mxu0 %v902
    %987 = vmatprep.subr.bf16.mxu0 0
    %988 = vmatpush2.bf16.msra.mxu0 %v901
    %989 = vmatprep.mubr.bf16.mxu0 %v611
    %990 = vmatmul.mubr.bf16.gmra.mxu0 %v610
    %v991 = vpop.f32.mrf.mxu0
    %v992 = vadd.f32 %v762, %v991
    %v993 = vpop.f32.mrf.mxu0
    %v994 = vpop.f32.mrf.mxu0
    %v995 = vpop.f32.mrf.mxu0
    %996 = vdwg.mxu0
    %997 = vmatprep.subr.bf16.mxu0 0
    %998 = vmatpush1.bf16.msra.mxu0 %v916
    %999 = vmatprep.subr.bf16.mxu0 0
    %1000 = vmatpush1.bf16.msra.mxu0 %v915
    %1001 = vmatprep.subr.bf16.mxu0 0
    %1002 = vmatpush1.bf16.msra.mxu0 %v914
    %1003 = vmatprep.subr.bf16.mxu0 0
    %1004 = vmatpush1.bf16.msra.mxu0 %v913
    %1005 = vmatprep.subr.bf16.mxu0 0
    %1006 = vmatpush1.bf16.msra.mxu0 %v912
    %1007 = vmatprep.subr.bf16.mxu0 0
    %1008 = vmatpush1.bf16.msra.mxu0 %v911
    %1009 = vmatprep.subr.bf16.mxu0 0
    %1010 = vmatpush1.bf16.msra.mxu0 %v910
    %1011 = vmatprep.subr.bf16.mxu0 0
    %1012 = vmatpush1.bf16.msra.mxu0 %v909
    %1013 = vmatprep.subr.bf16.mxu0 0
    %1014 = vmatpush2.bf16.msra.mxu0 %v924
    %1015 = vmatprep.subr.bf16.mxu0 0
    %1016 = vmatpush2.bf16.msra.mxu0 %v923
    %1017 = vmatprep.subr.bf16.mxu0 0
    %1018 = vmatpush2.bf16.msra.mxu0 %v922
    %1019 = vmatprep.subr.bf16.mxu0 0
    %1020 = vmatpush2.bf16.msra.mxu0 %v921
    %1021 = vmatprep.subr.bf16.mxu0 0
    %1022 = vmatpush2.bf16.msra.mxu0 %v920
    %1023 = vmatprep.subr.bf16.mxu0 0
    %1024 = vmatpush2.bf16.msra.mxu0 %v919
    %1025 = vmatprep.subr.bf16.mxu0 0
    %1026 = vmatpush2.bf16.msra.mxu0 %v918
    %1027 = vmatprep.subr.bf16.mxu0 0
    %1028 = vmatpush2.bf16.msra.mxu0 %v917
    %1029 = vmatprep.mubr.bf16.mxu0 %v613
    %1030 = vmatmul.mubr.bf16.gmra.mxu0 %v612
    %v1031 = vpop.f32.mrf.mxu0
    %v1032 = vadd.f32 %v992, %v1031
    %v1033 = vpop.f32.mrf.mxu0
    %v1034 = vpop.f32.mrf.mxu0
    %v1035 = vpop.f32.mrf.mxu0
    %1036 = vdwg.mxu0
    %1037 = vst [vmem:[#allocation5] sm:$0xff] %v1032
    // Predicated region
    $region26: #{tpu_custom_call.1} parent=1 // pred_check
      _
    $region27: #{tpu_custom_call.1} parent=1 // pred_check_branch
      %1039 = sbr.rel (0) target = $region29
    $region28: #{tpu_custom_call.1} parent=1 // pred_region
      %s1041 = ssub.s32 128, 128
      %1042 = vsyncadd [#allocation4], %s1041
      %s1044 = sshll.u32 [#allocation5], 4
      %s1045 = int_to_ptr.vmem [resolvable:$true] %s1044
      %1047 = dma.vmem_to_hbm [thread:$0]  %s1045, 128, %s5, [#allocation4]
    $region29: #{tpu_custom_call.1} parent=1 // pred_fallthru
      _
    // Predicated region
    $region30: #{tpu_custom_call.1} parent=1 // pred_check
      _
    $region31: #{tpu_custom_call.1} parent=1 // pred_check_branch
      %1049 = sbr.rel (0) target = $region33
    $region32: #{tpu_custom_call.1} parent=1 // pred_region
      %1050 = dma.done [#allocation4], 128
    $region33: #{tpu_custom_call.1} parent=1 // pred_fallthru
      _
    %1051 = vsyncpa [#allocation3], 1
    %1052 = vsyncpa [#allocation4], 1

</llo_original>
